<compile_context>
chip_gen: v5e
topology: v5e:2x2
jax: 0.10.0
libtpu: 0.0.40
codegen_flags: <defaults>
</compile_context>

<pallas_src>
import functools
import math

import jax
import jax.numpy as jnp
from jax import lax
from jax.experimental import pallas as pl
from jax.experimental.pallas import tpu as pltpu


def _attention_kernel(k_ref, q_ref, wk_ref, bk_ref, wq_ref, bq_ref,
                      wp_ref, bp_ref, *out_refs, n_head):
    out_ref = out_refs[0]
    score_ref = out_refs[1] if len(out_refs) > 1 else None

    K = k_ref[...]            # (mb, k_len, E)
    Q = q_ref[...]            # (mb, tq,  E)
    mb = K.shape[0]

    # contract x's last dim against the weights' in_features dim (no .T)
    dn = (((2,), (0,)), ((), ()))

    kx_heads = []
    scores = []
    for h in range(n_head):                      # n_head is small & static
        kx_h = lax.dot_general(K, wk_ref[h], dn,
                               preferred_element_type=jnp.float32) + bk_ref[h]
        qx_h = lax.dot_general(Q, wq_ref[h], dn,
                               preferred_element_type=jnp.float32) + bq_ref[h]
        # (scale already folded into wq/bq wrapper-side)
        s = jnp.einsum('bqd,bkd->bqk', qx_h, kx_h,
                       preferred_element_type=jnp.float32)   # (mb, tq, k_len)
        kx_heads.append(kx_h)
        scores.append(s)

    # Flat order matches torch's permute/view: flat index = h * mb + b.
    score = jnp.stack(scores, axis=0)                         # (H, mb, tq, k_len)
    score = score.reshape(n_head * mb, score.shape[2], score.shape[3])

    # ---- Softmax over dim=0 (heads*batch axis) — faithful to the reference ----
    m = jnp.max(score, axis=0, keepdims=True)
    e = jnp.exp(score - m)
    denom = jnp.sum(e, axis=0, keepdims=True)
    sm = e * pl.reciprocal(denom, approx=False)

    # ---- output = concat_h(sm_h @ kx_h) @ Wp.T + bp, computed as a per-head
    #      partial projection and summed (avoids lane-axis concatenation) ----
    final = None
    for h in range(n_head):
        sm_h = sm[h * mb:(h + 1) * mb]                         # (mb, tq, k_len)
        o_h = jnp.einsum('bqk,bkd->bqd', sm_h, kx_heads[h],
                         preferred_element_type=jnp.float32)   # (mb, tq, D)
        c = lax.dot_general(o_h, wp_ref[h], dn,
                            preferred_element_type=jnp.float32)  # (mb, tq, out)
        final = c if final is None else final + c
    final = final + bp_ref[...]
    # dropout(p=0) is the identity.

    out_ref[...] = final.astype(out_ref.dtype)
    if score_ref is not None:
        score_ref[...] = sm.astype(score_ref.dtype)


def attention_forward(k, q, params, *, n_head, hidden_dim,
                      score_function="dot_product", block_q=256,
                      return_score=True):
    if k.ndim == 2:
        k = k[:, None, :]
    if q.ndim == 2:
        q = q[:, None, :]
    mb, k_len, embed_dim = k.shape
    q_len = q.shape[1]
    D = hidden_dim
    HD = n_head * D
    out_dim = params["w_proj"].shape[0]

    if score_function == "dot_product":
        scale = 1.0
    elif score_function == "scaled_dot_product":
        scale = 1.0 / math.sqrt(D)
    else:
        # TODO(synk): 'mlp' and 'bi_linear' score functions not implemented.
        raise NotImplementedError(score_function)

    # --- One-time weight re-arrangement OUTSIDE the kernel (layout plumbing) ---
    # PyTorch (out, in) -> per-head (E, D) / (D, out_dim); scale folded into Q path.
    wk = params["w_k"].reshape(n_head, D, embed_dim).transpose(0, 2, 1)   # (H,E,D)
    wq = params["w_q"].reshape(n_head, D, embed_dim).transpose(0, 2, 1)   # (H,E,D)
    bk = params["b_k"].reshape(n_head, 1, D)                              # (H,1,D)
    bq = params["b_q"].reshape(n_head, 1, D)
    if scale != 1.0:
        wq = wq * scale
        bq = bq * scale
    wp = params["w_proj"].T.reshape(n_head, D, out_dim)                   # (H,D,out)
    bp = params["b_proj"].reshape(1, out_dim)

    # q-tile size: tiling q is safe (softmax couples only the head*batch axis,
    # which is never tiled).  Use block_q when it divides q_len, else one block.
    tq = q_len
    if q_len > block_q and block_q % 8 == 0 and q_len % block_q == 0:
        tq = block_q
    n_q_blocks = q_len // tq

    kernel = functools.partial(_attention_kernel, n_head=n_head)

    out_shapes = [jax.ShapeDtypeStruct((mb, q_len, out_dim), jnp.float32)]
    out_specs = [pl.BlockSpec((mb, tq, out_dim), lambda i: (0, i, 0))]
    if return_score:
        out_shapes.append(
            jax.ShapeDtypeStruct((n_head * mb, q_len, k_len), jnp.float32))
        out_specs.append(
            pl.BlockSpec((n_head * mb, tq, k_len), lambda i: (0, i, 0)))

    full3 = lambda i: (0, 0, 0)
    in_specs = [
        pl.BlockSpec((mb, k_len, embed_dim), full3),             # k (full, resident)
        pl.BlockSpec((mb, tq, embed_dim), lambda i: (0, i, 0)),  # q tile
        pl.BlockSpec((n_head, embed_dim, D), full3),             # wk
        pl.BlockSpec((n_head, 1, D), full3),                     # bk
        pl.BlockSpec((n_head, embed_dim, D), full3),             # wq (scaled)
        pl.BlockSpec((n_head, 1, D), full3),                     # bq (scaled)
        pl.BlockSpec((n_head, D, out_dim), full3),               # wp.T per head
        pl.BlockSpec((1, out_dim), lambda i: (0, 0)),            # bp
    ]

    flops = (2 * mb * (k_len + q_len) * embed_dim * HD        # K/Q projections
             + 4 * n_head * mb * q_len * k_len * D            # scores + context
             + 2 * mb * q_len * HD * out_dim)                 # output projection
    bytes_accessed = 4 * (k.size + q.size + wk.size + wq.size + bk.size
                          + bq.size + wp.size + bp.size + mb * q_len * out_dim
                          + (n_head * mb * q_len * k_len if return_score else 0))
    cost = pl.CostEstimate(flops=int(flops),
                           transcendentals=int(n_head * mb * q_len * k_len),
                           bytes_accessed=int(bytes_accessed))

    outs = pl.pallas_call(
        kernel,
        out_shape=tuple(out_shapes),
        grid=(n_q_blocks,),
        in_specs=in_specs,
        out_specs=tuple(out_specs),
        compiler_params=pltpu.CompilerParams(
            dimension_semantics=("parallel",),          # q tiles across TCs (v7x)
            vmem_limit_bytes=48 * 1024 * 1024),         # < v7x 64 MiB physical
        cost_estimate=cost,
    )(k, q, wk, bk, wq, bq, wp, bp)

    if return_score:
        return outs[0], outs[1]
    return outs[0], None


def init_params(key, embed_dim, n_head, hidden_dim, out_dim):
    hd = n_head * hidden_dim
    ks = jax.random.split(key, 6)

    def linear(kw, kb, out_f, in_f):
        bound = 1.0 / math.sqrt(in_f)
        w = jax.random.uniform(kw, (out_f, in_f), jnp.float32, -bound, bound)
        b = jax.random.uniform(kb, (1, out_f), jnp.float32, -bound, bound)
        return w, b

    w_k, b_k = linear(ks[0], ks[1], hd, embed_dim)
    w_q, b_q = linear(ks[2], ks[3], hd, embed_dim)
    w_p, b_p = linear(ks[4], ks[5], out_dim, hd)
    return dict(w_k=w_k, b_k=b_k, w_q=w_q, b_q=b_q, w_proj=w_p, b_proj=b_p)


def reference(k, q, params, n_head, hidden_dim, scale=1.0):
    """Pure-JAX mirror of the PyTorch forward (for correctness check)."""
    mb, k_len, _ = k.shape
    q_len = q.shape[1]
    D = hidden_dim
    kx = jnp.einsum("ble,oe->blo", k, params["w_k"]) + params["b_k"][0]
    qx = jnp.einsum("ble,oe->blo", q, params["w_q"]) + params["b_q"][0]
    kx = kx.reshape(mb, k_len, n_head, D).transpose(2, 0, 1, 3).reshape(-1, k_len, D)
    qx = qx.reshape(mb, q_len, n_head, D).transpose(2, 0, 1, 3).reshape(-1, q_len, D)
    score = jnp.einsum("bqd,bkd->bqk", qx, kx) * scale
    score = jax.nn.softmax(score, axis=0)
    out = jnp.einsum("bqk,bkd->bqd", score, kx)
    out = jnp.concatenate(jnp.split(out, n_head, axis=0), axis=-1)
    out = jnp.einsum("bqh,oh->bqo", out, params["w_proj"]) + params["b_proj"][0]
    return out, score


if __name__ == "__main__":
    embed_dim, n_head = 16, 2
    hidden_dim = embed_dim // n_head      # 8 (PyTorch default when hidden_dim=None)
    out_dim = embed_dim                   # 16 (PyTorch default when out_dim=None)
    mb, k_len, q_len = 2, 8, 8

    key = jax.random.PRNGKey(0)
    kp, kk, kq = jax.random.split(key, 3)
    params = init_params(kp, embed_dim, n_head, hidden_dim, out_dim)
    k = jax.random.normal(kk, (mb, k_len, embed_dim), jnp.float32)
    q = jax.random.normal(kq, (mb, q_len, embed_dim), jnp.float32)

    # --- dot_product ---
    out, score = attention_forward(k, q, params, n_head=n_head,
                                   hidden_dim=hidden_dim,
                                   score_function="dot_product")
    jax.block_until_ready((out, score))
    out_ref, score_ref = reference(k, q, params, n_head, hidden_dim, scale=1.0)
    assert out.shape == (mb, q_len, out_dim)
    assert score.shape == (n_head * mb, q_len, k_len)
    assert jnp.allclose(out, out_ref, atol=1e-4, rtol=1e-4)
    assert jnp.allclose(score, score_ref, atol=1e-5, rtol=1e-4)

    # --- scaled_dot_product (scale folded into wq/bq) ---
    out_s, score_s = attention_forward(k, q, params, n_head=n_head,
                                       hidden_dim=hidden_dim,
                                       score_function="scaled_dot_product")
    jax.block_until_ready((out_s, score_s))
    out_ref_s, score_ref_s = reference(k, q, params, n_head, hidden_dim,
                                       scale=1.0 / math.sqrt(hidden_dim))
    assert jnp.allclose(out_s, out_ref_s, atol=1e-4, rtol=1e-4)
    assert jnp.allclose(score_s, score_ref_s, atol=1e-5, rtol=1e-4)

    print("KERNEL_OK")
</pallas_src>

<mosaic_0001>
module attributes {stable_mosaic.version = 11 : i64} {
  func.func @_attention_kernel(%arg0: i32, %arg1: memref<2x8x16xf32, #tpu.memory_space<vmem>>, %arg2: memref<2x8x16xf32, #tpu.memory_space<vmem>>, %arg3: memref<2x16x8xf32, #tpu.memory_space<vmem>>, %arg4: memref<2x1x8xf32, #tpu.memory_space<vmem>>, %arg5: memref<2x16x8xf32, #tpu.memory_space<vmem>>, %arg6: memref<2x1x8xf32, #tpu.memory_space<vmem>>, %arg7: memref<2x8x16xf32, #tpu.memory_space<vmem>>, %arg8: memref<1x16xf32, #tpu.memory_space<vmem>>, %arg9: memref<2x8x16xf32, #tpu.memory_space<vmem>>, %arg10: memref<4x8x8xf32, #tpu.memory_space<vmem>>) attributes {dimension_semantics = [#tpu.dimension_semantics<parallel>], iteration_bounds = array<i64: 1>, scalar_prefetch = 0 : i64, scratch_operands = 0 : i64, tpu.core_type = #tpu.core_type<tc>, window_params = [{pipeline_mode = #tpu.pipeline_mode<synchronous>, transform_indices = @transform_0, window_bounds = array<i64: 2, 8, 16>}, {transform_indices = @transform_1, window_bounds = array<i64: 2, 8, 16>}, {pipeline_mode = #tpu.pipeline_mode<synchronous>, transform_indices = @transform_2, window_bounds = array<i64: 2, 16, 8>}, {pipeline_mode = #tpu.pipeline_mode<synchronous>, transform_indices = @transform_3, window_bounds = array<i64: 2, 1, 8>}, {pipeline_mode = #tpu.pipeline_mode<synchronous>, transform_indices = @transform_4, window_bounds = array<i64: 2, 16, 8>}, {pipeline_mode = #tpu.pipeline_mode<synchronous>, transform_indices = @transform_5, window_bounds = array<i64: 2, 1, 8>}, {pipeline_mode = #tpu.pipeline_mode<synchronous>, transform_indices = @transform_6, window_bounds = array<i64: 2, 8, 16>}, {pipeline_mode = #tpu.pipeline_mode<synchronous>, transform_indices = @transform_7, window_bounds = array<i64: 1, 16>}, {transform_indices = @transform_8, window_bounds = array<i64: 2, 8, 16>}, {transform_indices = @transform_9, window_bounds = array<i64: 4, 8, 8>}]} {
    %c0 = arith.constant 0 : index
    %c0_0 = arith.constant 0 : index
    %c0_1 = arith.constant 0 : index
    %0 = vector.load %arg1[%c0, %c0_0, %c0_1] : memref<2x8x16xf32, #tpu.memory_space<vmem>>, vector<2x8x16xf32>
    %c0_2 = arith.constant 0 : index
    %c0_3 = arith.constant 0 : index
    %c0_4 = arith.constant 0 : index
    %1 = vector.load %arg2[%c0_2, %c0_3, %c0_4] : memref<2x8x16xf32, #tpu.memory_space<vmem>>, vector<2x8x16xf32>
    %c0_5 = arith.constant 0 : index
    %c0_6 = arith.constant 0 : index
    %c0_7 = arith.constant 0 : index
    %2 = vector.load %arg3[%c0_5, %c0_6, %c0_7] : memref<2x16x8xf32, #tpu.memory_space<vmem>>, vector<1x16x8xf32>
    %3 = vector.shape_cast %2 : vector<1x16x8xf32> to vector<16x8xf32>
    %cst = arith.constant dense<0.000000e+00> : vector<2x8x8xf32>
    %4 = tpu.matmul %0, %3, %cst {dimension_numbers = #tpu.dot_dimension_numbers<[2], [0], [0, 1], [1], [0, 0, 0, 1, 1, 1], [], []>} : vector<2x8x16xf32>, vector<16x8xf32>, vector<2x8x8xf32> -> vector<2x8x8xf32>
    %c0_8 = arith.constant 0 : index
    %c0_9 = arith.constant 0 : index
    %c0_10 = arith.constant 0 : index
    %5 = vector.load %arg4[%c0_8, %c0_9, %c0_10] : memref<2x1x8xf32, #tpu.memory_space<vmem>>, vector<1x1x8xf32>
    %6 = vector.shape_cast %5 : vector<1x1x8xf32> to vector<1x8xf32>
    %7 = vector.shape_cast %6 : vector<1x8xf32> to vector<1x1x8xf32>
    %8 = vector.broadcast %7 : vector<1x1x8xf32> to vector<2x8x8xf32>
    %9 = arith.addf %4, %8 : vector<2x8x8xf32>
    %c0_11 = arith.constant 0 : index
    %c0_12 = arith.constant 0 : index
    %c0_13 = arith.constant 0 : index
    %10 = vector.load %arg5[%c0_11, %c0_12, %c0_13] : memref<2x16x8xf32, #tpu.memory_space<vmem>>, vector<1x16x8xf32>
    %11 = vector.shape_cast %10 : vector<1x16x8xf32> to vector<16x8xf32>
    %cst_14 = arith.constant dense<0.000000e+00> : vector<2x8x8xf32>
    %12 = tpu.matmul %1, %11, %cst_14 {dimension_numbers = #tpu.dot_dimension_numbers<[2], [0], [0, 1], [1], [0, 0, 0, 1, 1, 1], [], []>} : vector<2x8x16xf32>, vector<16x8xf32>, vector<2x8x8xf32> -> vector<2x8x8xf32>
    %c0_15 = arith.constant 0 : index
    %c0_16 = arith.constant 0 : index
    %c0_17 = arith.constant 0 : index
    %13 = vector.load %arg6[%c0_15, %c0_16, %c0_17] : memref<2x1x8xf32, #tpu.memory_space<vmem>>, vector<1x1x8xf32>
    %14 = vector.shape_cast %13 : vector<1x1x8xf32> to vector<1x8xf32>
    %15 = vector.shape_cast %14 : vector<1x8xf32> to vector<1x1x8xf32>
    %16 = vector.broadcast %15 : vector<1x1x8xf32> to vector<2x8x8xf32>
    %17 = arith.addf %12, %16 : vector<2x8x8xf32>
    "tpu.trace_start"() <{level = 10 : i32, message = "bqd,bkd->bqk"}> : () -> ()
    %cst_18 = arith.constant dense<0.000000e+00> : vector<2x8x8xf32>
    %18 = tpu.matmul %17, %9, %cst_18 {dimension_numbers = #tpu.dot_dimension_numbers<[2], [2], [1], [1], [0, 0, 0, 1, 1, 1], [0], [0]>} : vector<2x8x8xf32>, vector<2x8x8xf32>, vector<2x8x8xf32> -> vector<2x8x8xf32>
    "tpu.trace_stop"() : () -> ()
    %c1 = arith.constant 1 : index
    %c0_19 = arith.constant 0 : index
    %c0_20 = arith.constant 0 : index
    %19 = vector.load %arg3[%c1, %c0_19, %c0_20] : memref<2x16x8xf32, #tpu.memory_space<vmem>>, vector<1x16x8xf32>
    %20 = vector.shape_cast %19 : vector<1x16x8xf32> to vector<16x8xf32>
    %cst_21 = arith.constant dense<0.000000e+00> : vector<2x8x8xf32>
    %21 = tpu.matmul %0, %20, %cst_21 {dimension_numbers = #tpu.dot_dimension_numbers<[2], [0], [0, 1], [1], [0, 0, 0, 1, 1, 1], [], []>} : vector<2x8x16xf32>, vector<16x8xf32>, vector<2x8x8xf32> -> vector<2x8x8xf32>
    %c1_22 = arith.constant 1 : index
    %c0_23 = arith.constant 0 : index
    %c0_24 = arith.constant 0 : index
    %22 = vector.load %arg4[%c1_22, %c0_23, %c0_24] : memref<2x1x8xf32, #tpu.memory_space<vmem>>, vector<1x1x8xf32>
    %23 = vector.shape_cast %22 : vector<1x1x8xf32> to vector<1x8xf32>
    %24 = vector.shape_cast %23 : vector<1x8xf32> to vector<1x1x8xf32>
    %25 = vector.broadcast %24 : vector<1x1x8xf32> to vector<2x8x8xf32>
    %26 = arith.addf %21, %25 : vector<2x8x8xf32>
    %c1_25 = arith.constant 1 : index
    %c0_26 = arith.constant 0 : index
    %c0_27 = arith.constant 0 : index
    %27 = vector.load %arg5[%c1_25, %c0_26, %c0_27] : memref<2x16x8xf32, #tpu.memory_space<vmem>>, vector<1x16x8xf32>
    %28 = vector.shape_cast %27 : vector<1x16x8xf32> to vector<16x8xf32>
    %cst_28 = arith.constant dense<0.000000e+00> : vector<2x8x8xf32>
    %29 = tpu.matmul %1, %28, %cst_28 {dimension_numbers = #tpu.dot_dimension_numbers<[2], [0], [0, 1], [1], [0, 0, 0, 1, 1, 1], [], []>} : vector<2x8x16xf32>, vector<16x8xf32>, vector<2x8x8xf32> -> vector<2x8x8xf32>
    %c1_29 = arith.constant 1 : index
    %c0_30 = arith.constant 0 : index
    %c0_31 = arith.constant 0 : index
    %30 = vector.load %arg6[%c1_29, %c0_30, %c0_31] : memref<2x1x8xf32, #tpu.memory_space<vmem>>, vector<1x1x8xf32>
    %31 = vector.shape_cast %30 : vector<1x1x8xf32> to vector<1x8xf32>
    %32 = vector.shape_cast %31 : vector<1x8xf32> to vector<1x1x8xf32>
    %33 = vector.broadcast %32 : vector<1x1x8xf32> to vector<2x8x8xf32>
    %34 = arith.addf %29, %33 : vector<2x8x8xf32>
    "tpu.trace_start"() <{level = 10 : i32, message = "bqd,bkd->bqk"}> : () -> ()
    %cst_32 = arith.constant dense<0.000000e+00> : vector<2x8x8xf32>
    %35 = tpu.matmul %34, %26, %cst_32 {dimension_numbers = #tpu.dot_dimension_numbers<[2], [2], [1], [1], [0, 0, 0, 1, 1, 1], [0], [0]>} : vector<2x8x8xf32>, vector<2x8x8xf32>, vector<2x8x8xf32> -> vector<2x8x8xf32>
    "tpu.trace_stop"() : () -> ()
    %36 = vector.shape_cast %18 : vector<2x8x8xf32> to vector<1x2x8x8xf32>
    %37 = vector.shape_cast %35 : vector<2x8x8xf32> to vector<1x2x8x8xf32>
    %38 = tpu.concatenate %36, %37 in 0 : vector<1x2x8x8xf32>, vector<1x2x8x8xf32> -> vector<2x2x8x8xf32>
    %39 = vector.shape_cast %38 : vector<2x2x8x8xf32> to vector<4x8x8xf32>
    %cst_33 = arith.constant dense<0xFF800000> : vector<8x8xf32>
    %40 = vector.multi_reduction <maximumf>, %39, %cst_33 [0] : vector<4x8x8xf32> to vector<8x8xf32>
    %41 = vector.shape_cast %40 : vector<8x8xf32> to vector<1x8x8xf32>
    %42 = vector.broadcast %41 : vector<1x8x8xf32> to vector<4x8x8xf32>
    %43 = arith.subf %39, %42 : vector<4x8x8xf32>
    %44 = math.exp %43 : vector<4x8x8xf32>
    %cst_34 = arith.constant dense<0.000000e+00> : vector<8x8xf32>
    %45 = vector.multi_reduction <add>, %44, %cst_34 [0] : vector<4x8x8xf32> to vector<8x8xf32>
    %46 = vector.shape_cast %45 : vector<8x8xf32> to vector<1x8x8xf32>
    %47 = tpu.reciprocal %46 : vector<1x8x8xf32> -> vector<1x8x8xf32>
    %48 = vector.broadcast %47 : vector<1x8x8xf32> to vector<4x8x8xf32>
    %49 = arith.mulf %44, %48 : vector<4x8x8xf32>
    %50 = vector.extract_strided_slice %49 {offsets = [0, 0, 0], sizes = [2, 8, 8], strides = [1, 1, 1]} : vector<4x8x8xf32> to vector<2x8x8xf32>
    "tpu.trace_start"() <{level = 10 : i32, message = "bqk,bkd->bqd"}> : () -> ()
    %cst_35 = arith.constant dense<0.000000e+00> : vector<2x8x8xf32>
    %51 = tpu.matmul %50, %9, %cst_35 {dimension_numbers = #tpu.dot_dimension_numbers<[2], [1], [1], [2], [0, 0, 0, 1, 1, 2], [0], [0]>} : vector<2x8x8xf32>, vector<2x8x8xf32>, vector<2x8x8xf32> -> vector<2x8x8xf32>
    "tpu.trace_stop"() : () -> ()
    %c0_36 = arith.constant 0 : index
    %c0_37 = arith.constant 0 : index
    %c0_38 = arith.constant 0 : index
    %52 = vector.load %arg7[%c0_36, %c0_37, %c0_38] : memref<2x8x16xf32, #tpu.memory_space<vmem>>, vector<1x8x16xf32>
    %53 = vector.shape_cast %52 : vector<1x8x16xf32> to vector<8x16xf32>
    %cst_39 = arith.constant dense<0.000000e+00> : vector<2x8x16xf32>
    %54 = tpu.matmul %51, %53, %cst_39 {dimension_numbers = #tpu.dot_dimension_numbers<[2], [0], [0, 1], [1], [0, 0, 0, 1, 1, 1], [], []>} : vector<2x8x8xf32>, vector<8x16xf32>, vector<2x8x16xf32> -> vector<2x8x16xf32>
    %55 = vector.extract_strided_slice %49 {offsets = [2, 0, 0], sizes = [2, 8, 8], strides = [1, 1, 1]} : vector<4x8x8xf32> to vector<2x8x8xf32>
    "tpu.trace_start"() <{level = 10 : i32, message = "bqk,bkd->bqd"}> : () -> ()
    %cst_40 = arith.constant dense<0.000000e+00> : vector<2x8x8xf32>
    %56 = tpu.matmul %55, %26, %cst_40 {dimension_numbers = #tpu.dot_dimension_numbers<[2], [1], [1], [2], [0, 0, 0, 1, 1, 2], [0], [0]>} : vector<2x8x8xf32>, vector<2x8x8xf32>, vector<2x8x8xf32> -> vector<2x8x8xf32>
    "tpu.trace_stop"() : () -> ()
    %c1_41 = arith.constant 1 : index
    %c0_42 = arith.constant 0 : index
    %c0_43 = arith.constant 0 : index
    %57 = vector.load %arg7[%c1_41, %c0_42, %c0_43] : memref<2x8x16xf32, #tpu.memory_space<vmem>>, vector<1x8x16xf32>
    %58 = vector.shape_cast %57 : vector<1x8x16xf32> to vector<8x16xf32>
    %cst_44 = arith.constant dense<0.000000e+00> : vector<2x8x16xf32>
    %59 = tpu.matmul %56, %58, %cst_44 {dimension_numbers = #tpu.dot_dimension_numbers<[2], [0], [0, 1], [1], [0, 0, 0, 1, 1, 1], [], []>} : vector<2x8x8xf32>, vector<8x16xf32>, vector<2x8x16xf32> -> vector<2x8x16xf32>
    %60 = arith.addf %54, %59 : vector<2x8x16xf32>
    %c0_45 = arith.constant 0 : index
    %c0_46 = arith.constant 0 : index
    %61 = vector.load %arg8[%c0_45, %c0_46] : memref<1x16xf32, #tpu.memory_space<vmem>>, vector<1x16xf32>
    %62 = vector.shape_cast %61 : vector<1x16xf32> to vector<1x1x16xf32>
    %63 = vector.broadcast %62 : vector<1x1x16xf32> to vector<2x8x16xf32>
    %64 = arith.addf %60, %63 : vector<2x8x16xf32>
    %c0_47 = arith.constant 0 : index
    %c0_48 = arith.constant 0 : index
    %c0_49 = arith.constant 0 : index
    %65 = vector.load %arg9[%c0_47, %c0_48, %c0_49] : memref<2x8x16xf32, #tpu.memory_space<vmem>>, vector<2x8x16xf32>
    tpu.vector_store %arg9[%c0_47, %c0_48, %c0_49], %64 {strides = array<i32>} : memref<2x8x16xf32, #tpu.memory_space<vmem>>, vector<2x8x16xf32>,
    %c0_50 = arith.constant 0 : index
    %c0_51 = arith.constant 0 : index
    %c0_52 = arith.constant 0 : index
    %66 = vector.load %arg10[%c0_50, %c0_51, %c0_52] : memref<4x8x8xf32, #tpu.memory_space<vmem>>, vector<4x8x8xf32>
    tpu.vector_store %arg10[%c0_50, %c0_51, %c0_52], %49 {strides = array<i32>} : memref<4x8x8xf32, #tpu.memory_space<vmem>>, vector<4x8x8xf32>,
    return
  }
  func.func @transform_0(%arg0: i32) -> (i32, i32, i32) {
    %c0_i32 = arith.constant 0 : i32
    %c0_i32_0 = arith.constant 0 : i32
    %c0_i32_1 = arith.constant 0 : i32
    %c0_i32_2 = arith.constant 0 : i32
    return %c0_i32, %c0_i32_0, %c0_i32_1 : i32, i32, i32
  }
  func.func @transform_1(%arg0: i32) -> (i32, i32, i32) {
    %c0_i32 = arith.constant 0 : i32
    %c0_i32_0 = arith.constant 0 : i32
    %c0_i32_1 = arith.constant 0 : i32
    return %c0_i32, %arg0, %c0_i32_0 : i32, i32, i32
  }
  func.func @transform_2(%arg0: i32) -> (i32, i32, i32) {
    %c0_i32 = arith.constant 0 : i32
    %c0_i32_0 = arith.constant 0 : i32
    %c0_i32_1 = arith.constant 0 : i32
    %c0_i32_2 = arith.constant 0 : i32
    return %c0_i32, %c0_i32_0, %c0_i32_1 : i32, i32, i32
  }
  func.func @transform_3(%arg0: i32) -> (i32, i32, i32) {
    %c0_i32 = arith.constant 0 : i32
    %c0_i32_0 = arith.constant 0 : i32
    %c0_i32_1 = arith.constant 0 : i32
    %c0_i32_2 = arith.constant 0 : i32
    return %c0_i32, %c0_i32_0, %c0_i32_1 : i32, i32, i32
  }
  func.func @transform_4(%arg0: i32) -> (i32, i32, i32) {
    %c0_i32 = arith.constant 0 : i32
    %c0_i32_0 = arith.constant 0 : i32
    %c0_i32_1 = arith.constant 0 : i32
    %c0_i32_2 = arith.constant 0 : i32
    return %c0_i32, %c0_i32_0, %c0_i32_1 : i32, i32, i32
  }
  func.func @transform_5(%arg0: i32) -> (i32, i32, i32) {
    %c0_i32 = arith.constant 0 : i32
    %c0_i32_0 = arith.constant 0 : i32
    %c0_i32_1 = arith.constant 0 : i32
    %c0_i32_2 = arith.constant 0 : i32
    return %c0_i32, %c0_i32_0, %c0_i32_1 : i32, i32, i32
  }
  func.func @transform_6(%arg0: i32) -> (i32, i32, i32) {
    %c0_i32 = arith.constant 0 : i32
    %c0_i32_0 = arith.constant 0 : i32
    %c0_i32_1 = arith.constant 0 : i32
    %c0_i32_2 = arith.constant 0 : i32
    return %c0_i32, %c0_i32_0, %c0_i32_1 : i32, i32, i32
  }
  func.func @transform_7(%arg0: i32) -> (i32, i32) {
    %c0_i32 = arith.constant 0 : i32
    %c0_i32_0 = arith.constant 0 : i32
    %c0_i32_1 = arith.constant 0 : i32
    return %c0_i32, %c0_i32_0 : i32, i32
  }
  func.func @transform_8(%arg0: i32) -> (i32, i32, i32) {
    %c0_i32 = arith.constant 0 : i32
    %c0_i32_0 = arith.constant 0 : i32
    %c0_i32_1 = arith.constant 0 : i32
    return %c0_i32, %arg0, %c0_i32_0 : i32, i32, i32
  }
  func.func @transform_9(%arg0: i32) -> (i32, i32, i32) {
    %c0_i32 = arith.constant 0 : i32
    %c0_i32_0 = arith.constant 0 : i32
    %c0_i32_1 = arith.constant 0 : i32
    return %c0_i32, %arg0, %c0_i32_0 : i32, i32, i32
  }
}

</mosaic_0001>

<llo_original>
// kernel: tpu_custom_call.1
$region0: #{tpu_custom_call.1}
  #allocation0 [shape = 'u32[]', space=smem, size = 0x4, offset = 0x4, fixed_abs, tag = 'smem constant byte address 0x4 - core index']
  #allocation1 [shape = 'u32[72,128]{1,0:T(1,128)}', space=vmem, size = 0x9000, scoped, tag = 'internal scratch']
  %s0 = inlined_call_operand.vmem [shape: f32[2,8,16], index: 0, kind: input, shape index: {}]
  %s1 = inlined_call_operand.vmem [shape: f32[2,8,16], index: 1, kind: input, shape index: {}]
  %s2 = inlined_call_operand.vmem [shape: f32[2,16,8], index: 2, kind: input, shape index: {}]
  %s3 = inlined_call_operand.vmem [shape: f32[2,1,8], index: 3, kind: input, shape index: {}]
  %s4 = inlined_call_operand.vmem [shape: f32[2,16,8], index: 4, kind: input, shape index: {}]
  %s5 = inlined_call_operand.vmem [shape: f32[2,1,8], index: 5, kind: input, shape index: {}]
  %s6 = inlined_call_operand.vmem [shape: f32[2,8,16], index: 6, kind: input, shape index: {}]
  %s7 = inlined_call_operand.vmem [shape: f32[1,16], index: 7, kind: input, shape index: {}]
  %s8 = inlined_call_operand.hbm [shape: f32[2,8,16], index: 8, kind: output, shape index: {0}]
  %s9 = inlined_call_operand.hbm [shape: f32[4,8,8], index: 9, kind: output, shape index: {1}]
  %10 = xla_tuple %s8, %s9
  %s11 = sld [smem:[#allocation0]]
  $region50: #{tpu_custom_call.1} parent=0
    _
  %s13 = ssub.s32 1, %s11
  %s14 = scalar_select 0, %s13, %s11
  $region1: #{tpu_custom_call.1} parent=0
    #allocation2 [shape = 'u8[8192]{0}', space=vmem, size = 0x2000, scoped, tag = 'output window, operand 0, single buffered']
    #allocation3 [shape = 's32[1]{0}', space=sflag, size = 0x4, scoped, tag = 'scoped memory for tpu_custom_call.1']
    #allocation4 [shape = 'u8[16384]{0}', space=vmem, size = 0x4000, scoped, tag = 'output window, operand 1, single buffered']
    #allocation5 [shape = 's32[1]{0}', space=sflag, size = 0x4, scoped, tag = 'scoped memory for tpu_custom_call.1']
    %15 = vsyncpa [#allocation3], 0
    %16 = vsyncpa [#allocation5], 0
    // Predicated region
    $region2: #{tpu_custom_call.1} parent=1 // pred_check
      _
    $region3: #{tpu_custom_call.1} parent=1 // pred_check_branch
      %18 = sbr.rel (0) target = $region5
    $region4: #{tpu_custom_call.1} parent=1 // pred_region
      _
    $region5: #{tpu_custom_call.1} parent=1 // pred_fallthru
      _
    // Predicated region
    $region6: #{tpu_custom_call.1} parent=1 // pred_check
      _
    $region7: #{tpu_custom_call.1} parent=1 // pred_check_branch
      %20 = sbr.rel (0) target = $region9
    $region8: #{tpu_custom_call.1} parent=1 // pred_region
      _
    $region9: #{tpu_custom_call.1} parent=1 // pred_fallthru
      _
    // Predicated region
    $region10: #{tpu_custom_call.1} parent=1 // pred_check
      _
    $region11: #{tpu_custom_call.1} parent=1 // pred_check_branch
      %22 = sbr.rel (0) target = $region13
    $region12: #{tpu_custom_call.1} parent=1 // pred_region
      _
    $region13: #{tpu_custom_call.1} parent=1 // pred_fallthru
      _
    // Predicated region
    $region14: #{tpu_custom_call.1} parent=1 // pred_check
      _
    $region15: #{tpu_custom_call.1} parent=1 // pred_check_branch
      %24 = sbr.rel (0) target = $region17
    $region16: #{tpu_custom_call.1} parent=1 // pred_region
      _
    $region17: #{tpu_custom_call.1} parent=1 // pred_fallthru
      _
    // Predicated region
    $region18: #{tpu_custom_call.1} parent=1 // pred_check
      _
    $region19: #{tpu_custom_call.1} parent=1 // pred_check_branch
      %26 = sbr.rel (0) target = $region21
    $region20: #{tpu_custom_call.1} parent=1 // pred_region
      _
    $region21: #{tpu_custom_call.1} parent=1 // pred_fallthru
      _
    // Predicated region
    $region22: #{tpu_custom_call.1} parent=1 // pred_check
      _
    $region23: #{tpu_custom_call.1} parent=1 // pred_check_branch
      %28 = sbr.rel (0) target = $region25
    $region24: #{tpu_custom_call.1} parent=1 // pred_region
      _
    $region25: #{tpu_custom_call.1} parent=1 // pred_fallthru
      _
    // Predicated region
    $region26: #{tpu_custom_call.1} parent=1 // pred_check
      _
    $region27: #{tpu_custom_call.1} parent=1 // pred_check_branch
      %30 = sbr.rel (0) target = $region29
    $region28: #{tpu_custom_call.1} parent=1 // pred_region
      _
    $region29: #{tpu_custom_call.1} parent=1 // pred_fallthru
      _
    // Predicated region
    $region30: #{tpu_custom_call.1} parent=1 // pred_check
      _
    $region31: #{tpu_custom_call.1} parent=1 // pred_check_branch
      %32 = sbr.rel (0) target = $region33
    $region32: #{tpu_custom_call.1} parent=1 // pred_region
      _
    $region33: #{tpu_custom_call.1} parent=1 // pred_fallthru
      _
    %v33 = vld [vmem:[%s0] sm:$0xff]
    %v34 = vld [vmem:[%s0 + $0x8] sm:$0xff]
    %v35 = vld [vmem:[%s1] sm:$0xff]
    %v36 = vld [vmem:[%s1 + $0x8] sm:$0xff]
    %v37 = vld [vmem:[%s2] sm:$0xff]
    %v38 = vld [vmem:[%s2 + $0x8] sm:$0xff]
    %v39 = vld [vmem:[%s3] sm:$0x1]
    %v41 = vperm.slane %v39, 0
    %vm43 = vcmask 130048
    %v45 = vsel %vm43, %v33, 0
    %v48 = vsel %vm43, %v34, 0
    %50 = vmatpush.msra.mxu0 0.0
    %51 = vmatpush.msra.mxu0 0.0
    %52 = vmatpush.msra.mxu0 0.0
    %53 = vmatpush.msra.mxu0 0.0
    %54 = vmatpush.msra.mxu0 0.0
    %55 = vmatpush.msra.mxu0 0.0
    %56 = vmatpush.msra.mxu0 0.0
    %57 = vmatpush.msra.mxu0 0.0
    %58 = vmatpush.msra.mxu0 0.0
    %59 = vmatpush.msra.mxu0 0.0
    %60 = vmatpush.msra.mxu0 0.0
    %61 = vmatpush.msra.mxu0 0.0
    %62 = vmatpush.msra.mxu0 0.0
    %63 = vmatpush.msra.mxu0 0.0
    %64 = vmatpush.msra.mxu0 %v38
    %65 = vmatpush.msra.mxu0 %v37
    %66 = vmatmul.f32.gmra.mxu0 %v45
    %v67 = vpop.f32.mrf.mxu0
    %v68 = vadd.f32 %v41, %v67
    %69 = vmatmul.f32.gmra.mxu0 %v48
    %v70 = vpop.f32.mrf.mxu0
    %v71 = vadd.f32 %v41, %v70
    %72 = vdwg.mxu0
    %v73 = vld [vmem:[%s4] sm:$0xff]
    %v74 = vld [vmem:[%s4 + $0x8] sm:$0xff]
    %v75 = vld [vmem:[%s5] sm:$0x1]
    %v77 = vperm.slane %v75, 0
    %v80 = vsel %vm43, %v35, 0
    %v83 = vsel %vm43, %v36, 0
    %85 = vmatpush.msra.mxu0 0.0
    %86 = vmatpush.msra.mxu0 0.0
    %87 = vmatpush.msra.mxu0 0.0
    %88 = vmatpush.msra.mxu0 0.0
    %89 = vmatpush.msra.mxu0 0.0
    %90 = vmatpush.msra.mxu0 0.0
    %91 = vmatpush.msra.mxu0 0.0
    %92 = vmatpush.msra.mxu0 0.0
    %93 = vmatpush.msra.mxu0 0.0
    %94 = vmatpush.msra.mxu0 0.0
    %95 = vmatpush.msra.mxu0 0.0
    %96 = vmatpush.msra.mxu0 0.0
    %97 = vmatpush.msra.mxu0 0.0
    %98 = vmatpush.msra.mxu0 0.0
    %99 = vmatpush.msra.mxu0 %v74
    %100 = vmatpush.msra.mxu0 %v73
    %101 = vmatmul.f32.gmra.mxu0 %v80
    %v102 = vpop.f32.mrf.mxu0
    %v103 = vadd.f32 %v77, %v102
    %104 = vmatmul.f32.gmra.mxu0 %v83
    %v105 = vpop.f32.mrf.mxu0
    %v106 = vadd.f32 %v77, %v105
    %107 = vdwg.mxu0
    %vm108 = vcmask 64512
    %v110 = vsel %vm108, %v103, 0
    %v113 = vsel %vm108, %v68, 0
    %115 = vmatpush.xpose.msra.mxu0 0.0
    %116 = vmatpush.xpose.msra.mxu0 0.0
    %117 = vmatpush.xpose.msra.mxu0 0.0
    %118 = vmatpush.xpose.msra.mxu0 0.0
    %119 = vmatpush.xpose.msra.mxu0 0.0
    %120 = vmatpush.xpose.msra.mxu0 0.0
    %121 = vmatpush.xpose.msra.mxu0 0.0
    %122 = vmatpush.xpose.msra.mxu0 0.0
    %123 = vmatpush.xpose.msra.mxu0 0.0
    %124 = vmatpush.xpose.msra.mxu0 0.0
    %125 = vmatpush.xpose.msra.mxu0 0.0
    %126 = vmatpush.xpose.msra.mxu0 0.0
    %127 = vmatpush.xpose.msra.mxu0 0.0
    %128 = vmatpush.xpose.msra.mxu0 0.0
    %129 = vmatpush.xpose.msra.mxu0 0.0
    %130 = vmatpush.xpose.msra.mxu0 %v113
    %131 = vmatmul.f32.gmra.mxu0 %v110
    %v132 = vpop.f32.mrf.mxu0
    %v133 = vadd.f32 0.0, %v132
    %134 = vdwg.mxu0
    %v136 = vsel %vm108, %v106, 0
    %v139 = vsel %vm108, %v71, 0
    %141 = vmatpush.xpose.msra.mxu0 0.0
    %142 = vmatpush.xpose.msra.mxu0 0.0
    %143 = vmatpush.xpose.msra.mxu0 0.0
    %144 = vmatpush.xpose.msra.mxu0 0.0
    %145 = vmatpush.xpose.msra.mxu0 0.0
    %146 = vmatpush.xpose.msra.mxu0 0.0
    %147 = vmatpush.xpose.msra.mxu0 0.0
    %148 = vmatpush.xpose.msra.mxu0 0.0
    %149 = vmatpush.xpose.msra.mxu0 0.0
    %150 = vmatpush.xpose.msra.mxu0 0.0
    %151 = vmatpush.xpose.msra.mxu0 0.0
    %152 = vmatpush.xpose.msra.mxu0 0.0
    %153 = vmatpush.xpose.msra.mxu0 0.0
    %154 = vmatpush.xpose.msra.mxu0 0.0
    %155 = vmatpush.xpose.msra.mxu0 0.0
    %156 = vmatpush.xpose.msra.mxu0 %v139
    %157 = vmatmul.f32.gmra.mxu0 %v136
    %v158 = vpop.f32.mrf.mxu0
    %v159 = vadd.f32 0.0, %v158
    %160 = vdwg.mxu0
    %s161 = scalar_lea.vmem %s2, 16
    %v162 = vld [vmem:[%s161] sm:$0xff]
    %v163 = vld [vmem:[%s161 + $0x8] sm:$0xff]
    %s164 = scalar_lea.vmem %s3, 1
    %v165 = vld [vmem:[%s164] sm:$0x1]
    %v167 = vperm.slane %v165, 0
    %169 = vmatpush.msra.mxu0 0.0
    %170 = vmatpush.msra.mxu0 0.0
    %171 = vmatpush.msra.mxu0 0.0
    %172 = vmatpush.msra.mxu0 0.0
    %173 = vmatpush.msra.mxu0 0.0
    %174 = vmatpush.msra.mxu0 0.0
    %175 = vmatpush.msra.mxu0 0.0
    %176 = vmatpush.msra.mxu0 0.0
    %177 = vmatpush.msra.mxu0 0.0
    %178 = vmatpush.msra.mxu0 0.0
    %179 = vmatpush.msra.mxu0 0.0
    %180 = vmatpush.msra.mxu0 0.0
    %181 = vmatpush.msra.mxu0 0.0
    %182 = vmatpush.msra.mxu0 0.0
    %183 = vmatpush.msra.mxu0 %v163
    %184 = vmatpush.msra.mxu0 %v162
    %185 = vmatmul.f32.gmra.mxu0 %v45
    %v186 = vpop.f32.mrf.mxu0
    %v187 = vadd.f32 %v167, %v186
    %188 = vmatmul.f32.gmra.mxu0 %v48
    %v189 = vpop.f32.mrf.mxu0
    %v190 = vadd.f32 %v167, %v189
    %191 = vdwg.mxu0
    %s192 = scalar_lea.vmem %s4, 16
    %v193 = vld [vmem:[%s192] sm:$0xff]
    %v194 = vld [vmem:[%s192 + $0x8] sm:$0xff]
    %s195 = scalar_lea.vmem %s5, 1
    %v196 = vld [vmem:[%s195] sm:$0x1]
    %v198 = vperm.slane %v196, 0
    %200 = vmatpush.msra.mxu0 0.0
    %201 = vmatpush.msra.mxu0 0.0
    %202 = vmatpush.msra.mxu0 0.0
    %203 = vmatpush.msra.mxu0 0.0
    %204 = vmatpush.msra.mxu0 0.0
    %205 = vmatpush.msra.mxu0 0.0
    %206 = vmatpush.msra.mxu0 0.0
    %207 = vmatpush.msra.mxu0 0.0
    %208 = vmatpush.msra.mxu0 0.0
    %209 = vmatpush.msra.mxu0 0.0
    %210 = vmatpush.msra.mxu0 0.0
    %211 = vmatpush.msra.mxu0 0.0
    %212 = vmatpush.msra.mxu0 0.0
    %213 = vmatpush.msra.mxu0 0.0
    %214 = vmatpush.msra.mxu0 %v194
    %215 = vmatpush.msra.mxu0 %v193
    %216 = vmatmul.f32.gmra.mxu0 %v80
    %v217 = vpop.f32.mrf.mxu0
    %v218 = vadd.f32 %v198, %v217
    %219 = vmatmul.f32.gmra.mxu0 %v83
    %v220 = vpop.f32.mrf.mxu0
    %v221 = vadd.f32 %v198, %v220
    %222 = vdwg.mxu0
    %v224 = vsel %vm108, %v218, 0
    %v227 = vsel %vm108, %v187, 0
    %229 = vmatpush.xpose.msra.mxu0 0.0
    %230 = vmatpush.xpose.msra.mxu0 0.0
    %231 = vmatpush.xpose.msra.mxu0 0.0
    %232 = vmatpush.xpose.msra.mxu0 0.0
    %233 = vmatpush.xpose.msra.mxu0 0.0
    %234 = vmatpush.xpose.msra.mxu0 0.0
    %235 = vmatpush.xpose.msra.mxu0 0.0
    %236 = vmatpush.xpose.msra.mxu0 0.0
    %237 = vmatpush.xpose.msra.mxu0 0.0
    %238 = vmatpush.xpose.msra.mxu0 0.0
    %239 = vmatpush.xpose.msra.mxu0 0.0
    %240 = vmatpush.xpose.msra.mxu0 0.0
    %241 = vmatpush.xpose.msra.mxu0 0.0
    %242 = vmatpush.xpose.msra.mxu0 0.0
    %243 = vmatpush.xpose.msra.mxu0 0.0
    %244 = vmatpush.xpose.msra.mxu0 %v227
    %245 = vmatmul.f32.gmra.mxu0 %v224
    %v246 = vpop.f32.mrf.mxu0
    %v247 = vadd.f32 0.0, %v246
    %248 = vdwg.mxu0
    %v250 = vsel %vm108, %v221, 0
    %v253 = vsel %vm108, %v190, 0
    %255 = vmatpush.xpose.msra.mxu0 0.0
    %256 = vmatpush.xpose.msra.mxu0 0.0
    %257 = vmatpush.xpose.msra.mxu0 0.0
    %258 = vmatpush.xpose.msra.mxu0 0.0
    %259 = vmatpush.xpose.msra.mxu0 0.0
    %260 = vmatpush.xpose.msra.mxu0 0.0
    %261 = vmatpush.xpose.msra.mxu0 0.0
    %262 = vmatpush.xpose.msra.mxu0 0.0
    %263 = vmatpush.xpose.msra.mxu0 0.0
    %264 = vmatpush.xpose.msra.mxu0 0.0
    %265 = vmatpush.xpose.msra.mxu0 0.0
    %266 = vmatpush.xpose.msra.mxu0 0.0
    %267 = vmatpush.xpose.msra.mxu0 0.0
    %268 = vmatpush.xpose.msra.mxu0 0.0
    %269 = vmatpush.xpose.msra.mxu0 0.0
    %270 = vmatpush.xpose.msra.mxu0 %v253
    %271 = vmatmul.f32.gmra.mxu0 %v250
    %v272 = vpop.f32.mrf.mxu0
    %v273 = vadd.f32 0.0, %v272
    %274 = vdwg.mxu0
    %v275 = vsel %vm108, %v133, -inf
    %v276 = vsel %vm108, %v159, -inf
    %v277 = vsel %vm108, %v247, -inf
    %v278 = vsel %vm108, %v273, -inf
    %v279 = vmax.f32 %v275, %v276
    %v280 = vmax.f32 %v277, %v278
    %v281 = vmax.f32 %v279, %v280
    %v282 = vsub.f32 %v133, %v281
    %v283 = vsub.f32 %v159, %v281
    %v284 = vsub.f32 %v247, %v281
    %v285 = vsub.f32 %v273, %v281
    %v286 = vmul.f32 %v282, 1.442695
    %v287 = vpow.pop %v286
    %v288 = vmul.f32 %v283, 1.442695
    %v289 = vpow.pop %v288
    %v290 = vmul.f32 %v284, 1.442695
    %v291 = vpow.pop %v290
    %v292 = vmul.f32 %v285, 1.442695
    %v293 = vpow.pop %v292
    %v294 = vsel %vm108, %v287, 0.0
    %v295 = vsel %vm108, %v289, 0.0
    %v296 = vadd.f32 %v294, %v295
    %v297 = vsel %vm108, %v291, 0.0
    %v298 = vadd.f32 %v296, %v297
    %v299 = vsel %vm108, %v293, 0.0
    %v300 = vadd.f32 %v298, %v299
    %v301 = vrcp.pop %v300
    %v302 = vmul.f32 %v300, %v301
    %v303 = vsub.f32 1.0, %v302
    %v304 = vmul.f32 %v301, %v303
    %v305 = vadd.f32 %v301, %v304
    %vm306 = vweird.f32 %v300
    %vm307 = vweird.f32 %v301
    %vm308 = vmor %vm306, %vm307
    %v309 = vsel %vm308, %v301, %v305
    %v310 = vand.u32 2147483647, %v300
    %vm311 = vcmp.eq.f32.partialorder %v310, 8.507059e+37
    %v312 = vand.u32 %v300, 2147483648
    %v313 = vor.u32 1.1754944e-38, %v312
    %v314 = vsel %vm311, %v313, %v309
    %v315 = vmul.f32 %v287, %v314
    %v316 = vmul.f32 %v289, %v314
    %v317 = vmul.f32 %v291, %v314
    %v318 = vmul.f32 %v293, %v314
    %v320 = vsel %vm108, %v315, 0
    %322 = vmatpush.msra.mxu0 0.0
    %323 = vmatpush.msra.mxu0 0.0
    %324 = vmatpush.msra.mxu0 0.0
    %325 = vmatpush.msra.mxu0 0.0
    %326 = vmatpush.msra.mxu0 0.0
    %327 = vmatpush.msra.mxu0 0.0
    %328 = vmatpush.msra.mxu0 0.0
    %329 = vmatpush.msra.mxu0 0.0
    %330 = vmatpush.msra.mxu0 0.0
    %331 = vmatpush.msra.mxu0 0.0
    %332 = vmatpush.msra.mxu0 0.0
    %333 = vmatpush.msra.mxu0 0.0
    %334 = vmatpush.msra.mxu0 0.0
    %335 = vmatpush.msra.mxu0 0.0
    %336 = vmatpush.msra.mxu0 0.0
    %337 = vmatpush.msra.mxu0 %v68
    %338 = vmatmul.f32.gmra.mxu0 %v320
    %v339 = vpop.f32.mrf.mxu0
    %v340 = vadd.f32 0.0, %v339
    %341 = vdwg.mxu0
    %v343 = vsel %vm108, %v316, 0
    %345 = vmatpush.msra.mxu0 0.0
    %346 = vmatpush.msra.mxu0 0.0
    %347 = vmatpush.msra.mxu0 0.0
    %348 = vmatpush.msra.mxu0 0.0
    %349 = vmatpush.msra.mxu0 0.0
    %350 = vmatpush.msra.mxu0 0.0
    %351 = vmatpush.msra.mxu0 0.0
    %352 = vmatpush.msra.mxu0 0.0
    %353 = vmatpush.msra.mxu0 0.0
    %354 = vmatpush.msra.mxu0 0.0
    %355 = vmatpush.msra.mxu0 0.0
    %356 = vmatpush.msra.mxu0 0.0
    %357 = vmatpush.msra.mxu0 0.0
    %358 = vmatpush.msra.mxu0 0.0
    %359 = vmatpush.msra.mxu0 0.0
    %360 = vmatpush.msra.mxu0 %v71
    %361 = vmatmul.f32.gmra.mxu0 %v343
    %v362 = vpop.f32.mrf.mxu0
    %v363 = vadd.f32 0.0, %v362
    %364 = vdwg.mxu0
    %v365 = vld [vmem:[%s6] sm:$0xff]
    %v367 = vsel %vm108, %v317, 0
    %369 = vmatpush.msra.mxu0 0.0
    %370 = vmatpush.msra.mxu0 0.0
    %371 = vmatpush.msra.mxu0 0.0
    %372 = vmatpush.msra.mxu0 0.0
    %373 = vmatpush.msra.mxu0 0.0
    %374 = vmatpush.msra.mxu0 0.0
    %375 = vmatpush.msra.mxu0 0.0
    %376 = vmatpush.msra.mxu0 0.0
    %377 = vmatpush.msra.mxu0 0.0
    %378 = vmatpush.msra.mxu0 0.0
    %379 = vmatpush.msra.mxu0 0.0
    %380 = vmatpush.msra.mxu0 0.0
    %381 = vmatpush.msra.mxu0 0.0
    %382 = vmatpush.msra.mxu0 0.0
    %383 = vmatpush.msra.mxu0 0.0
    %384 = vmatpush.msra.mxu0 %v187
    %385 = vmatmul.f32.gmra.mxu0 %v367
    %v386 = vpop.f32.mrf.mxu0
    %v387 = vadd.f32 0.0, %v386
    %388 = vdwg.mxu0
    %v390 = vsel %vm108, %v318, 0
    %392 = vmatpush.msra.mxu0 0.0
    %393 = vmatpush.msra.mxu0 0.0
    %394 = vmatpush.msra.mxu0 0.0
    %395 = vmatpush.msra.mxu0 0.0
    %396 = vmatpush.msra.mxu0 0.0
    %397 = vmatpush.msra.mxu0 0.0
    %398 = vmatpush.msra.mxu0 0.0
    %399 = vmatpush.msra.mxu0 0.0
    %400 = vmatpush.msra.mxu0 0.0
    %401 = vmatpush.msra.mxu0 0.0
    %402 = vmatpush.msra.mxu0 0.0
    %403 = vmatpush.msra.mxu0 0.0
    %404 = vmatpush.msra.mxu0 0.0
    %405 = vmatpush.msra.mxu0 0.0
    %406 = vmatpush.msra.mxu0 0.0
    %407 = vmatpush.msra.mxu0 %v190
    %408 = vmatmul.f32.gmra.mxu0 %v390
    %v409 = vpop.f32.mrf.mxu0
    %v410 = vadd.f32 0.0, %v409
    %411 = vdwg.mxu0
    %s412 = scalar_lea.vmem %s6, 8
    %v413 = vld [vmem:[%s412] sm:$0xff]
    %v415 = vsel %vm108, %v387, 0
    %v418 = vsel %vm108, %v410, 0
    %420 = vmatpush.msra.mxu0 0.0
    %421 = vmatpush.msra.mxu0 0.0
    %422 = vmatpush.msra.mxu0 0.0
    %423 = vmatpush.msra.mxu0 0.0
    %424 = vmatpush.msra.mxu0 0.0
    %425 = vmatpush.msra.mxu0 0.0
    %426 = vmatpush.msra.mxu0 0.0
    %427 = vmatpush.msra.mxu0 0.0
    %428 = vmatpush.msra.mxu0 0.0
    %429 = vmatpush.msra.mxu0 0.0
    %430 = vmatpush.msra.mxu0 0.0
    %431 = vmatpush.msra.mxu0 0.0
    %432 = vmatpush.msra.mxu0 0.0
    %433 = vmatpush.msra.mxu0 0.0
    %434 = vmatpush.msra.mxu0 0.0
    %435 = vmatpush.msra.mxu0 %v413
    %436 = vmatmul.f32.gmra.mxu0 %v415
    %v437 = vpop.f32.mrf.mxu0
    %v438 = vadd.f32 0.0, %v437
    %439 = vmatmul.f32.gmra.mxu0 %v418
    %v440 = vpop.f32.mrf.mxu0
    %v441 = vadd.f32 0.0, %v440
    %442 = vdwg.mxu0
    %v444 = vsel %vm108, %v340, 0
    %v447 = vsel %vm108, %v363, 0
    %449 = vmatpush.msra.mxu0 0.0
    %450 = vmatpush.msra.mxu0 0.0
    %451 = vmatpush.msra.mxu0 0.0
    %452 = vmatpush.msra.mxu0 0.0
    %453 = vmatpush.msra.mxu0 0.0
    %454 = vmatpush.msra.mxu0 0.0
    %455 = vmatpush.msra.mxu0 0.0
    %456 = vmatpush.msra.mxu0 0.0
    %457 = vmatpush.msra.mxu0 0.0
    %458 = vmatpush.msra.mxu0 0.0
    %459 = vmatpush.msra.mxu0 0.0
    %460 = vmatpush.msra.mxu0 0.0
    %461 = vmatpush.msra.mxu0 0.0
    %462 = vmatpush.msra.mxu0 0.0
    %463 = vmatpush.msra.mxu0 0.0
    %464 = vmatpush.msra.mxu0 %v365
    %465 = vmatmul.f32.gmra.mxu0 %v444
    %v466 = vpop.f32.mrf.mxu0
    %v467 = vadd.f32 %v438, %v466
    %468 = vmatmul.f32.gmra.mxu0 %v447
    %v469 = vpop.f32.mrf.mxu0
    %v470 = vadd.f32 %v441, %v469
    %471 = vdwg.mxu0
    %v472 = vld [vmem:[%s7] sm:$0x1]
    %v474 = vperm.slane %v472, 0
    %v476 = vadd.f32 %v467, %v474
    %v477 = vadd.f32 %v470, %v474
    %478 = vst.msk [vmem:[#allocation2] sm:$0xff] %vm43, %v476
    %479 = vst.msk [vmem:[#allocation2 + $0x8] sm:$0xff] %vm43, %v477
    %480 = vst.msk [vmem:[#allocation4] sm:$0xff] %vm108, %v315
    %481 = vst.msk [vmem:[#allocation4 + $0x8] sm:$0xff] %vm108, %v316
    %482 = vst.msk [vmem:[#allocation4 + $0x10] sm:$0xff] %vm108, %v317
    %483 = vst.msk [vmem:[#allocation4 + $0x18] sm:$0xff] %vm108, %v318
    // Predicated region
    $region34: #{tpu_custom_call.1} parent=1 // pred_check
      _
    $region35: #{tpu_custom_call.1} parent=1 // pred_check_branch
      %485 = sbr.rel (0) target = $region37
    $region36: #{tpu_custom_call.1} parent=1 // pred_region
      %487 = vsyncadd [#allocation3], 0
      %s488 = sshll.u32 [#allocation2], 4
      %s489 = int_to_ptr.vmem [resolvable:$true] %s488
      %s490 = sshll.u32 %s8, 4
      %s491 = int_to_ptr.hbm [resolvable:$true] %s490
      %496 = dma.vmem_to_hbm [thread:$0]  %s489, 256, %s491, [#allocation3], 128, 128, 8
    $region37: #{tpu_custom_call.1} parent=1 // pred_fallthru
      _
    // Predicated region
    $region38: #{tpu_custom_call.1} parent=1 // pred_check
      _
    $region39: #{tpu_custom_call.1} parent=1 // pred_check_branch
      %498 = sbr.rel (0) target = $region41
    $region40: #{tpu_custom_call.1} parent=1 // pred_region
      %500 = vsyncadd [#allocation5], 0
      %s501 = sshll.u32 [#allocation4], 4
      %s502 = int_to_ptr.vmem [resolvable:$true] %s501
      %s503 = sshll.u32 %s9, 4
      %s504 = int_to_ptr.hbm [resolvable:$true] %s503
      %509 = dma.vmem_to_hbm [thread:$0]  %s502, 512, %s504, [#allocation5], 128, 128, 8
    $region41: #{tpu_custom_call.1} parent=1 // pred_fallthru
      _
    // Predicated region
    $region42: #{tpu_custom_call.1} parent=1 // pred_check
      _
    $region43: #{tpu_custom_call.1} parent=1 // pred_check_branch
      %511 = sbr.rel (0) target = $region45
    $region44: #{tpu_custom_call.1} parent=1 // pred_region
      %513 = dma.done [#allocation3], 256
    $region45: #{tpu_custom_call.1} parent=1 // pred_fallthru
      _
    // Predicated region
    $region46: #{tpu_custom_call.1} parent=1 // pred_check
      _
    $region47: #{tpu_custom_call.1} parent=1 // pred_check_branch
      %515 = sbr.rel (0) target = $region49
    $region48: #{tpu_custom_call.1} parent=1 // pred_region
      %517 = dma.done [#allocation5], 512
    $region49: #{tpu_custom_call.1} parent=1 // pred_fallthru
      _
    %518 = vsyncpa [#allocation3], 1
    %519 = vsyncpa [#allocation5], 1

</llo_original>
